<compile_context>
chip_gen: v6e
topology: v6e:2x2x1
jax: 0.10.0
libtpu: 0.0.40
codegen_flags: <defaults>
</compile_context>

<pallas_src>
import functools

import jax
import jax.numpy as jnp
from jax.experimental import pallas as pl
from jax.experimental.pallas import tpu as pltpu

SUB = 256       # register-resident batch sub-chunk (multiple of 128 lanes)
TB_MAX = 8192   # max batch tile (columns) per grid step


def _round_up(n, m):
    return ((n + m - 1) // m) * m


def mlp_kernel(x_ref,
               w1_ref,
               w2_ref, b2_ref,
               w3_ref, b3_ref,
               w4_ref, b4_ref,
               o_ref, *, sub):
    """Fused 4-layer MLP, (features, batch) layout, LeakyReLU(0.01) between 1-3.

    x_ref : (9, TB)  -- row 8 is the constant 1.0 row (layer-1 bias folded)
    w1_ref: (64, 9)  -- [W1 | b1]
    w2_ref: (32, 64)   b2_ref: (32, 1)
    w3_ref: (16, 32)   b3_ref: (16, 1)
    w4_ref: (2, 16)    b4_ref: (2, 1)
    o_ref : (2, TB)
    """
    n_sub = x_ref.shape[1] // sub   # static trip count

    def leaky_relu(h):
        # 2 VPU ops (mul + max) instead of 3 (cmp + mul + select).
        return jnp.maximum(h, 0.01 * h)

    def body(s, carry):
        c0 = pl.multiple_of(s * sub, sub)
        cols = pl.ds(c0, sub)

        h = x_ref[:, cols]                                              # (9, sub)

        # Layer 1 (+ folded bias): (64, 9) @ (9, sub)
        h = jnp.dot(w1_ref[...], h, preferred_element_type=jnp.float32)
        h = leaky_relu(h)          # Dropout(p=0) -> identity

        # Layer 2: (32, 64) @ (64, sub) + (32, 1)
        h = jnp.dot(w2_ref[...], h, preferred_element_type=jnp.float32) + b2_ref[...]
        h = leaky_relu(h)          # Dropout(p=0) -> identity

        # Layer 3: (16, 32) @ (32, sub) + (16, 1)
        h = jnp.dot(w3_ref[...], h, preferred_element_type=jnp.float32) + b3_ref[...]
        h = leaky_relu(h)

        # Layer 4 (no activation): (2, 16) @ (16, sub) + (2, 1)
        h = jnp.dot(w4_ref[...], h, preferred_element_type=jnp.float32) + b4_ref[...]

        o_ref[:, cols] = h.astype(o_ref.dtype)
        return carry

    jax.lax.fori_loop(0, n_sub, body, 0)


@functools.partial(jax.jit, static_argnames=("tb_max", "sub"))
def linear_class_forward(x, params, *, tb_max=TB_MAX, sub=SUB):
    """Forward pass of LinearClass. x: (B, 8) float32 -> (B, 2) float32."""
    B = x.shape[0]
    (w1, b1), (w2, b2), (w3, b3), (w4, b4) = params

    # Fold layer-1 bias into the matmul: b1 becomes an extra weight column,
    # the input gets a constant-ones row (K: 8 -> 9, free on the MXU).
    w1a = jnp.concatenate([w1, b1], axis=1)                    # (64, 9)

    # Adaptive tiling: pad waste < `sub` columns per tile; use an even number
    # (>= 2) of grid steps once the batch is big enough so the "parallel"
    # axis really splits across both v7x TensorCores.
    if B >= 2 * sub:
        num_tiles = max(2, pl.cdiv(B, tb_max))
        if num_tiles % 2:
            num_tiles += 1
    else:
        num_tiles = 1
    TB = _round_up(pl.cdiv(B, num_tiles), sub)
    B_pad = num_tiles * TB

    # Lane-dense (features, batch) layout with the appended ones row.
    xt = jnp.concatenate([jnp.transpose(x), jnp.ones((1, B), x.dtype)], axis=0)
    if B_pad != B:
        xt = jnp.pad(xt, ((0, 0), (0, B_pad - B)))             # (9, B_pad)

    def resident_spec(arr):
        # Full-array block with constant block index: DMA'd once, stays
        # resident in VMEM across all grid steps.
        return pl.BlockSpec(arr.shape, lambda i: (0, 0))

    n_param_floats = 64 * 9 + (64 * 32 + 32) + (32 * 16 + 16) + (16 * 2 + 2)
    cost = pl.CostEstimate(
        flops=2 * 3168 * B_pad,            # 2*(9*64 + 64*32 + 32*16 + 16*2)/row
        transcendentals=0,
        bytes_accessed=B_pad * (9 + 2) * 4 + n_param_floats * 4,
    )

    out_t = pl.pallas_call(
        functools.partial(mlp_kernel, sub=sub),
        out_shape=jax.ShapeDtypeStruct((2, B_pad), jnp.float32),
        grid=(num_tiles,),
        in_specs=[
            pl.BlockSpec((9, TB), lambda i: (0, i)),           # streamed input tile
            resident_spec(w1a),
            resident_spec(w2), resident_spec(b2),
            resident_spec(w3), resident_spec(b3),
            resident_spec(w4), resident_spec(b4),
        ],
        out_specs=pl.BlockSpec((2, TB), lambda i: (0, i)),     # lane-dense output
        compiler_params=pltpu.CompilerParams(
            dimension_semantics=("parallel",),                 # megacore on v7x
            vmem_limit_bytes=32 * 1024 * 1024,
        ),
        cost_estimate=cost,
    )(xt, w1a, w2, b2, w3, b3, w4, b4)

    return jnp.transpose(out_t[:, :B])                         # (B, 2)


def init_params(key):
    """Deterministic init mimicking torch.nn.Linear (uniform +/- 1/sqrt(fan_in)).

    Weights in torch's (out, in) layout; biases as (out, 1).
    """
    dims = [(8, 64), (64, 32), (32, 16), (16, 2)]
    params = []
    for (fan_in, fan_out) in dims:
        key, kw, kb = jax.random.split(key, 3)
        bound = 1.0 / jnp.sqrt(fan_in)
        w = jax.random.uniform(kw, (fan_out, fan_in), jnp.float32, -bound, bound)
        b = jax.random.uniform(kb, (fan_out, 1), jnp.float32, -bound, bound)
        params.append((w, b))
    return params


def reference_forward(x, params):
    """Plain-JAX reference (torch convention: x @ W.T + b)."""
    h = x
    for i, (w, b) in enumerate(params):
        h = h @ w.T + b[:, 0]
        if i < 3:
            h = jnp.maximum(h, 0.01 * h)
    return h


if __name__ == "__main__":
    key = jax.random.PRNGKey(0)
    key, k_small, k_multi = jax.random.split(key, 3)
    params = init_params(key)

    # Small single-tile case + a case that exercises multiple grid steps,
    # multiple register-resident sub-chunks, padding and the slice-back path.
    for batch, kx in ((8, k_small), (600, k_multi)):
        x = jax.random.normal(kx, (batch, 8), jnp.float32)
        out = jax.block_until_ready(linear_class_forward(x, params))
        ref = reference_forward(x, params)
        assert out.shape == (batch, 2), out.shape
        assert jnp.allclose(out, ref, atol=1e-5, rtol=1e-5), \
            f"mismatch vs reference at batch={batch}"

    print("KERNEL_OK")
</pallas_src>

<mosaic_0001>
module attributes {stable_mosaic.version = 11 : i64} {
  func.func @mlp_kernel(%arg0: i32, %arg1: memref<9x256xf32, #tpu.memory_space<vmem>>, %arg2: memref<64x9xf32, #tpu.memory_space<vmem>>, %arg3: memref<32x64xf32, #tpu.memory_space<vmem>>, %arg4: memref<32x1xf32, #tpu.memory_space<vmem>>, %arg5: memref<16x32xf32, #tpu.memory_space<vmem>>, %arg6: memref<16x1xf32, #tpu.memory_space<vmem>>, %arg7: memref<2x16xf32, #tpu.memory_space<vmem>>, %arg8: memref<2x1xf32, #tpu.memory_space<vmem>>, %arg9: memref<2x256xf32, #tpu.memory_space<vmem>>) attributes {dimension_semantics = [#tpu.dimension_semantics<parallel>], iteration_bounds = array<i64: 1>, scalar_prefetch = 0 : i64, scratch_operands = 0 : i64, tpu.core_type = #tpu.core_type<tc>, window_params = [{transform_indices = @transform_0, window_bounds = array<i64: 9, 256>}, {pipeline_mode = #tpu.pipeline_mode<synchronous>, transform_indices = @transform_1, window_bounds = array<i64: 64, 9>}, {pipeline_mode = #tpu.pipeline_mode<synchronous>, transform_indices = @transform_2, window_bounds = array<i64: 32, 64>}, {pipeline_mode = #tpu.pipeline_mode<synchronous>, transform_indices = @transform_3, window_bounds = array<i64: 32, 1>}, {pipeline_mode = #tpu.pipeline_mode<synchronous>, transform_indices = @transform_4, window_bounds = array<i64: 16, 32>}, {pipeline_mode = #tpu.pipeline_mode<synchronous>, transform_indices = @transform_5, window_bounds = array<i64: 16, 1>}, {pipeline_mode = #tpu.pipeline_mode<synchronous>, transform_indices = @transform_6, window_bounds = array<i64: 2, 16>}, {pipeline_mode = #tpu.pipeline_mode<synchronous>, transform_indices = @transform_7, window_bounds = array<i64: 2, 1>}, {transform_indices = @transform_8, window_bounds = array<i64: 2, 256>}]} {
    %c0_i32 = arith.constant 0 : i32
    %c256_i32 = arith.constant 256 : i32
    %0 = arith.muli %c0_i32, %c256_i32 : i32
    %1 = tpu.assume_multiple %0, 256 : i32
    %c0 = arith.constant 0 : index
    %2 = arith.index_cast %1 : i32 to index
    %3 = vector.load %arg1[%c0, %2] : memref<9x256xf32, #tpu.memory_space<vmem>>, vector<9x256xf32>
    %c0_0 = arith.constant 0 : index
    %c0_1 = arith.constant 0 : index
    %4 = vector.load %arg2[%c0_0, %c0_1] : memref<64x9xf32, #tpu.memory_space<vmem>>, vector<64x9xf32>
    %cst = arith.constant dense<0.000000e+00> : vector<64x256xf32>
    %5 = tpu.matmul %4, %3, %cst {dimension_numbers = #tpu.dot_dimension_numbers<[1], [0], [0], [1], [0, 0, 1, 1], [], []>} : vector<64x9xf32>, vector<9x256xf32>, vector<64x256xf32> -> vector<64x256xf32>
    %cst_2 = arith.constant 0.00999999977 : f32
    %6 = vector.broadcast %cst_2 : f32 to vector<64x256xf32>
    %7 = arith.mulf %6, %5 : vector<64x256xf32>
    %8 = arith.maximumf %5, %7 : vector<64x256xf32>
    %c0_3 = arith.constant 0 : index
    %c0_4 = arith.constant 0 : index
    %9 = vector.load %arg3[%c0_3, %c0_4] : memref<32x64xf32, #tpu.memory_space<vmem>>, vector<32x64xf32>
    %cst_5 = arith.constant dense<0.000000e+00> : vector<32x256xf32>
    %10 = tpu.matmul %9, %8, %cst_5 {dimension_numbers = #tpu.dot_dimension_numbers<[1], [0], [0], [1], [0, 0, 1, 1], [], []>} : vector<32x64xf32>, vector<64x256xf32>, vector<32x256xf32> -> vector<32x256xf32>
    %c0_6 = arith.constant 0 : index
    %c0_7 = arith.constant 0 : index
    %11 = vector.load %arg4[%c0_6, %c0_7] : memref<32x1xf32, #tpu.memory_space<vmem>>, vector<32x1xf32>
    %12 = vector.broadcast %11 : vector<32x1xf32> to vector<32x256xf32>
    %13 = arith.addf %10, %12 : vector<32x256xf32>
    %cst_8 = arith.constant 0.00999999977 : f32
    %14 = vector.broadcast %cst_8 : f32 to vector<32x256xf32>
    %15 = arith.mulf %14, %13 : vector<32x256xf32>
    %16 = arith.maximumf %13, %15 : vector<32x256xf32>
    %c0_9 = arith.constant 0 : index
    %c0_10 = arith.constant 0 : index
    %17 = vector.load %arg5[%c0_9, %c0_10] : memref<16x32xf32, #tpu.memory_space<vmem>>, vector<16x32xf32>
    %cst_11 = arith.constant dense<0.000000e+00> : vector<16x256xf32>
    %18 = tpu.matmul %17, %16, %cst_11 {dimension_numbers = #tpu.dot_dimension_numbers<[1], [0], [0], [1], [0, 0, 1, 1], [], []>} : vector<16x32xf32>, vector<32x256xf32>, vector<16x256xf32> -> vector<16x256xf32>
    %c0_12 = arith.constant 0 : index
    %c0_13 = arith.constant 0 : index
    %19 = vector.load %arg6[%c0_12, %c0_13] : memref<16x1xf32, #tpu.memory_space<vmem>>, vector<16x1xf32>
    %20 = vector.broadcast %19 : vector<16x1xf32> to vector<16x256xf32>
    %21 = arith.addf %18, %20 : vector<16x256xf32>
    %cst_14 = arith.constant 0.00999999977 : f32
    %22 = vector.broadcast %cst_14 : f32 to vector<16x256xf32>
    %23 = arith.mulf %22, %21 : vector<16x256xf32>
    %24 = arith.maximumf %21, %23 : vector<16x256xf32>
    %c0_15 = arith.constant 0 : index
    %c0_16 = arith.constant 0 : index
    %25 = vector.load %arg7[%c0_15, %c0_16] : memref<2x16xf32, #tpu.memory_space<vmem>>, vector<2x16xf32>
    %cst_17 = arith.constant dense<0.000000e+00> : vector<2x256xf32>
    %26 = tpu.matmul %25, %24, %cst_17 {dimension_numbers = #tpu.dot_dimension_numbers<[1], [0], [0], [1], [0, 0, 1, 1], [], []>} : vector<2x16xf32>, vector<16x256xf32>, vector<2x256xf32> -> vector<2x256xf32>
    %c0_18 = arith.constant 0 : index
    %c0_19 = arith.constant 0 : index
    %27 = vector.load %arg8[%c0_18, %c0_19] : memref<2x1xf32, #tpu.memory_space<vmem>>, vector<2x1xf32>
    %28 = vector.broadcast %27 : vector<2x1xf32> to vector<2x256xf32>
    %29 = arith.addf %26, %28 : vector<2x256xf32>
    %c0_20 = arith.constant 0 : index
    %30 = arith.index_cast %1 : i32 to index
    %31 = vector.load %arg9[%c0_20, %30] : memref<2x256xf32, #tpu.memory_space<vmem>>, vector<2x256xf32>
    tpu.vector_store %arg9[%c0_20, %30], %29 {strides = array<i32>} : memref<2x256xf32, #tpu.memory_space<vmem>>, vector<2x256xf32>,
    %c1_i32 = arith.constant 1 : i32
    return
  }
  func.func @transform_0(%arg0: i32) -> (i32, i32) {
    %c0_i32 = arith.constant 0 : i32
    %c0_i32_0 = arith.constant 0 : i32
    return %c0_i32, %arg0 : i32, i32
  }
  func.func @transform_1(%arg0: i32) -> (i32, i32) {
    %c0_i32 = arith.constant 0 : i32
    %c0_i32_0 = arith.constant 0 : i32
    %c0_i32_1 = arith.constant 0 : i32
    return %c0_i32, %c0_i32_0 : i32, i32
  }
  func.func @transform_2(%arg0: i32) -> (i32, i32) {
    %c0_i32 = arith.constant 0 : i32
    %c0_i32_0 = arith.constant 0 : i32
    %c0_i32_1 = arith.constant 0 : i32
    return %c0_i32, %c0_i32_0 : i32, i32
  }
  func.func @transform_3(%arg0: i32) -> (i32, i32) {
    %c0_i32 = arith.constant 0 : i32
    %c0_i32_0 = arith.constant 0 : i32
    %c0_i32_1 = arith.constant 0 : i32
    return %c0_i32, %c0_i32_0 : i32, i32
  }
  func.func @transform_4(%arg0: i32) -> (i32, i32) {
    %c0_i32 = arith.constant 0 : i32
    %c0_i32_0 = arith.constant 0 : i32
    %c0_i32_1 = arith.constant 0 : i32
    return %c0_i32, %c0_i32_0 : i32, i32
  }
  func.func @transform_5(%arg0: i32) -> (i32, i32) {
    %c0_i32 = arith.constant 0 : i32
    %c0_i32_0 = arith.constant 0 : i32
    %c0_i32_1 = arith.constant 0 : i32
    return %c0_i32, %c0_i32_0 : i32, i32
  }
  func.func @transform_6(%arg0: i32) -> (i32, i32) {
    %c0_i32 = arith.constant 0 : i32
    %c0_i32_0 = arith.constant 0 : i32
    %c0_i32_1 = arith.constant 0 : i32
    return %c0_i32, %c0_i32_0 : i32, i32
  }
  func.func @transform_7(%arg0: i32) -> (i32, i32) {
    %c0_i32 = arith.constant 0 : i32
    %c0_i32_0 = arith.constant 0 : i32
    %c0_i32_1 = arith.constant 0 : i32
    return %c0_i32, %c0_i32_0 : i32, i32
  }
  func.func @transform_8(%arg0: i32) -> (i32, i32) {
    %c0_i32 = arith.constant 0 : i32
    %c0_i32_0 = arith.constant 0 : i32
    return %c0_i32, %arg0 : i32, i32
  }
}

</mosaic_0001>

<llo_original>
// kernel: linear_class_forward.1
$region0: #{linear_class_forward.1}
  #allocation0 [shape = 'u32[]', space=smem, size = 0x4, offset = 0x4, fixed_abs, tag = 'smem constant byte address 0x4 - core index']
  #allocation1 [shape = 'u32[144,128]{1,0:T(1,128)}', space=vmem, size = 0x12000, scoped, tag = 'internal scratch']
  %s0 = inlined_call_operand.vmem [shape: f32[9,256], index: 0, kind: input, shape index: {}]
  %s1 = inlined_call_operand.vmem [shape: f32[64,9], index: 1, kind: input, shape index: {}]
  %s2 = inlined_call_operand.vmem [shape: f32[32,64], index: 2, kind: input, shape index: {}]
  %s3 = inlined_call_operand.vmem [shape: f32[32,1], index: 3, kind: input, shape index: {}]
  %s4 = inlined_call_operand.vmem [shape: f32[16,32], index: 4, kind: input, shape index: {}]
  %s5 = inlined_call_operand.vmem [shape: f32[16,1], index: 5, kind: input, shape index: {}]
  %s6 = inlined_call_operand.vmem [shape: f32[2,16], index: 6, kind: input, shape index: {}]
  %s7 = inlined_call_operand.vmem [shape: f32[2,1], index: 7, kind: input, shape index: {}]
  %s8 = inlined_call_operand.vmem [shape: f32[2,256], index: 8, kind: output, shape index: {}]
  %s9 = sld [smem:[#allocation0]]
  $region42: #{linear_class_forward.1} parent=0
    _
  %s11 = ssub.s32 1, %s9
  %s12 = scalar_select 0, %s11, %s9
  // Predicated region
  $region2: #{linear_class_forward.1} parent=0 // pred_check
    _
  $region3: #{linear_class_forward.1} parent=0 // pred_check_branch
    %14 = sbr.rel (0) target = $region5
  $region4: #{linear_class_forward.1} parent=0 // pred_region
    _
  $region5: #{linear_class_forward.1} parent=0 // pred_fallthru
    _
  // Predicated region
  $region6: #{linear_class_forward.1} parent=0 // pred_check
    _
  $region7: #{linear_class_forward.1} parent=0 // pred_check_branch
    %16 = sbr.rel (0) target = $region9
  $region8: #{linear_class_forward.1} parent=0 // pred_region
    _
  $region9: #{linear_class_forward.1} parent=0 // pred_fallthru
    _
  // Predicated region
  $region10: #{linear_class_forward.1} parent=0 // pred_check
    _
  $region11: #{linear_class_forward.1} parent=0 // pred_check_branch
    %18 = sbr.rel (0) target = $region13
  $region12: #{linear_class_forward.1} parent=0 // pred_region
    _
  $region13: #{linear_class_forward.1} parent=0 // pred_fallthru
    _
  // Predicated region
  $region14: #{linear_class_forward.1} parent=0 // pred_check
    _
  $region15: #{linear_class_forward.1} parent=0 // pred_check_branch
    %20 = sbr.rel (0) target = $region17
  $region16: #{linear_class_forward.1} parent=0 // pred_region
    _
  $region17: #{linear_class_forward.1} parent=0 // pred_fallthru
    _
  // Predicated region
  $region18: #{linear_class_forward.1} parent=0 // pred_check
    _
  $region19: #{linear_class_forward.1} parent=0 // pred_check_branch
    %22 = sbr.rel (0) target = $region21
  $region20: #{linear_class_forward.1} parent=0 // pred_region
    _
  $region21: #{linear_class_forward.1} parent=0 // pred_fallthru
    _
  // Predicated region
  $region22: #{linear_class_forward.1} parent=0 // pred_check
    _
  $region23: #{linear_class_forward.1} parent=0 // pred_check_branch
    %24 = sbr.rel (0) target = $region25
  $region24: #{linear_class_forward.1} parent=0 // pred_region
    _
  $region25: #{linear_class_forward.1} parent=0 // pred_fallthru
    _
  // Predicated region
  $region26: #{linear_class_forward.1} parent=0 // pred_check
    _
  $region27: #{linear_class_forward.1} parent=0 // pred_check_branch
    %26 = sbr.rel (0) target = $region29
  $region28: #{linear_class_forward.1} parent=0 // pred_region
    _
  $region29: #{linear_class_forward.1} parent=0 // pred_fallthru
    _
  // Predicated region
  $region30: #{linear_class_forward.1} parent=0 // pred_check
    _
  $region31: #{linear_class_forward.1} parent=0 // pred_check_branch
    %28 = sbr.rel (0) target = $region33
  $region32: #{linear_class_forward.1} parent=0 // pred_region
    _
  $region33: #{linear_class_forward.1} parent=0 // pred_fallthru
    _
  %v29 = vld [vmem:[%s0] sm:$0xff]
  %v30 = vld [vmem:[%s0 + $0x8] sm:$0xff]
  %v31 = vld [vmem:[%s0 + $0x10] sm:$0x1]
  %v32 = vld [vmem:[%s0 + $0x18] sm:$0x1]
  %v33 = vld [vmem:[%s1] sm:$0xff]
  %v34 = vld [vmem:[%s1 + $0x8] sm:$0xff]
  %v35 = vld [vmem:[%s1 + $0x10] sm:$0xff]
  %v36 = vld [vmem:[%s1 + $0x18] sm:$0xff]
  %v37 = vld [vmem:[%s1 + $0x20] sm:$0xff]
  %v38 = vld [vmem:[%s1 + $0x28] sm:$0xff]
  %v39 = vld [vmem:[%s1 + $0x30] sm:$0xff]
  %v40 = vld [vmem:[%s1 + $0x38] sm:$0xff]
  %vm41 = vcmask 72704
  %v43 = vsel %vm41, %v33, 0
  %v46 = vsel %vm41, %v34, 0
  %v49 = vsel %vm41, %v35, 0
  %v52 = vsel %vm41, %v36, 0
  %v55 = vsel %vm41, %v37, 0
  %v58 = vsel %vm41, %v38, 0
  %v61 = vsel %vm41, %v39, 0
  %v64 = vsel %vm41, %v40, 0
  %vm66 = vcmask 1040384
  %v68 = vsel %vm66, %v31, 0
  %v71 = vsel %vm66, %v32, 0
  %73 = vmatprep.subr.mxu0 0.0
  %74 = vmatpush1.msra.mxu0 0.0
  %75 = vmatprep.subr.mxu0 0.0
  %76 = vmatpush1.msra.mxu0 0.0
  %77 = vmatprep.subr.mxu0 0.0
  %78 = vmatpush1.msra.mxu0 0.0
  %79 = vmatprep.subr.mxu0 0.0
  %80 = vmatpush1.msra.mxu0 0.0
  %81 = vmatprep.subr.mxu0 0.0
  %82 = vmatpush1.msra.mxu0 0.0
  %83 = vmatprep.subr.mxu0 0.0
  %84 = vmatpush1.msra.mxu0 0.0
  %85 = vmatprep.subr.mxu0 0.0
  %86 = vmatpush1.msra.mxu0 0.0
  %87 = vmatprep.subr.mxu0 0.0
  %88 = vmatpush1.msra.mxu0 0.0
  %89 = vmatprep.subr.mxu0 0.0
  %90 = vmatpush1.msra.mxu0 0.0
  %91 = vmatprep.subr.mxu0 0.0
  %92 = vmatpush1.msra.mxu0 0.0
  %93 = vmatprep.subr.mxu0 0.0
  %94 = vmatpush1.msra.mxu0 0.0
  %95 = vmatprep.subr.mxu0 0.0
  %96 = vmatpush1.msra.mxu0 0.0
  %97 = vmatprep.subr.mxu0 0.0
  %98 = vmatpush1.msra.mxu0 0.0
  %99 = vmatprep.subr.mxu0 0.0
  %100 = vmatpush1.msra.mxu0 0.0
  %101 = vmatprep.subr.mxu0 %v71
  %102 = vmatpush1.msra.mxu0 %v68
  %103 = vmatprep.subr.mxu0 %v30
  %104 = vmatpush1.msra.mxu0 %v29
  %105 = vmatprep.subr.mxu0 0.0
  %106 = vmatpush2.msra.mxu0 0.0
  %107 = vmatprep.subr.mxu0 0.0
  %108 = vmatpush2.msra.mxu0 0.0
  %109 = vmatprep.subr.mxu0 0.0
  %110 = vmatpush2.msra.mxu0 0.0
  %111 = vmatprep.subr.mxu0 0.0
  %112 = vmatpush2.msra.mxu0 0.0
  %113 = vmatprep.subr.mxu0 0.0
  %114 = vmatpush2.msra.mxu0 0.0
  %115 = vmatprep.subr.mxu0 0.0
  %116 = vmatpush2.msra.mxu0 0.0
  %117 = vmatprep.subr.mxu0 0.0
  %118 = vmatpush2.msra.mxu0 0.0
  %119 = vmatprep.subr.mxu0 0.0
  %120 = vmatpush2.msra.mxu0 0.0
  %121 = vmatprep.subr.mxu0 0.0
  %122 = vmatpush2.msra.mxu0 0.0
  %123 = vmatprep.subr.mxu0 0.0
  %124 = vmatpush2.msra.mxu0 0.0
  %125 = vmatprep.subr.mxu0 0.0
  %126 = vmatpush2.msra.mxu0 0.0
  %127 = vmatprep.subr.mxu0 0.0
  %128 = vmatpush2.msra.mxu0 0.0
  %129 = vmatprep.subr.mxu0 0.0
  %130 = vmatpush2.msra.mxu0 0.0
  %131 = vmatprep.subr.mxu0 0.0
  %132 = vmatpush2.msra.mxu0 0.0
  %133 = vmatprep.subr.mxu0 0.0
  %134 = vmatpush2.msra.mxu0 0.0
  %135 = vmatprep.subr.mxu0 0.0
  %136 = vmatpush2.msra.mxu0 0.0
  %137 = vmatprep.mubr.f32.mxu0 0.0
  %138 = vmatmul.mubr.f32.gmra.mxu0 %v43
  %v139 = vpop.f32.mrf.mxu0
  %v140 = vadd.f32 0.0, %v139
  %v141 = vpop.f32.mrf.mxu0
  %v142 = vadd.f32 0.0, %v141
  %143 = vmatprep.mubr.f32.mxu0 0.0
  %144 = vmatmul.mubr.f32.gmra.mxu0 %v46
  %v145 = vpop.f32.mrf.mxu0
  %v146 = vadd.f32 0.0, %v145
  %v147 = vpop.f32.mrf.mxu0
  %v148 = vadd.f32 0.0, %v147
  %149 = vmatprep.mubr.f32.mxu0 0.0
  %150 = vmatmul.mubr.f32.gmra.mxu0 %v49
  %v151 = vpop.f32.mrf.mxu0
  %v152 = vadd.f32 0.0, %v151
  %v153 = vpop.f32.mrf.mxu0
  %v154 = vadd.f32 0.0, %v153
  %155 = vmatprep.mubr.f32.mxu0 0.0
  %156 = vmatmul.mubr.f32.gmra.mxu0 %v52
  %v157 = vpop.f32.mrf.mxu0
  %v158 = vadd.f32 0.0, %v157
  %v159 = vpop.f32.mrf.mxu0
  %v160 = vadd.f32 0.0, %v159
  %161 = vmatprep.mubr.f32.mxu0 0.0
  %162 = vmatmul.mubr.f32.gmra.mxu0 %v55
  %v163 = vpop.f32.mrf.mxu0
  %v164 = vadd.f32 0.0, %v163
  %v165 = vpop.f32.mrf.mxu0
  %v166 = vadd.f32 0.0, %v165
  %167 = vmatprep.mubr.f32.mxu0 0.0
  %168 = vmatmul.mubr.f32.gmra.mxu0 %v58
  %v169 = vpop.f32.mrf.mxu0
  %v170 = vadd.f32 0.0, %v169
  %v171 = vpop.f32.mrf.mxu0
  %v172 = vadd.f32 0.0, %v171
  %173 = vmatprep.mubr.f32.mxu0 0.0
  %174 = vmatmul.mubr.f32.gmra.mxu0 %v61
  %v175 = vpop.f32.mrf.mxu0
  %v176 = vadd.f32 0.0, %v175
  %v177 = vpop.f32.mrf.mxu0
  %v178 = vadd.f32 0.0, %v177
  %179 = vmatprep.mubr.f32.mxu0 0.0
  %180 = vmatmul.mubr.f32.gmra.mxu0 %v64
  %v181 = vpop.f32.mrf.mxu0
  %v182 = vadd.f32 0.0, %v181
  %v183 = vpop.f32.mrf.mxu0
  %v184 = vadd.f32 0.0, %v183
  %185 = vdwg.mxu0
  %v186 = vmul.f32 %v140, 0.01
  %v187 = vmul.f32 %v142, 0.01
  %v188 = vmul.f32 %v146, 0.01
  %v189 = vmul.f32 %v148, 0.01
  %v190 = vmul.f32 %v152, 0.01
  %v191 = vmul.f32 %v154, 0.01
  %v192 = vmul.f32 %v158, 0.01
  %v193 = vmul.f32 %v160, 0.01
  %v194 = vmul.f32 %v164, 0.01
  %v195 = vmul.f32 %v166, 0.01
  %v196 = vmul.f32 %v170, 0.01
  %v197 = vmul.f32 %v172, 0.01
  %v198 = vmul.f32 %v176, 0.01
  %v199 = vmul.f32 %v178, 0.01
  %v200 = vmul.f32 %v182, 0.01
  %v201 = vmul.f32 %v184, 0.01
  %v202 = vmax.f32 %v140, %v186
  %v203 = vmax.f32 %v142, %v187
  %v204 = vmax.f32 %v146, %v188
  %v205 = vmax.f32 %v148, %v189
  %v206 = vmax.f32 %v152, %v190
  %v207 = vmax.f32 %v154, %v191
  %v208 = vmax.f32 %v158, %v192
  %v209 = vmax.f32 %v160, %v193
  %v210 = vmax.f32 %v164, %v194
  %v211 = vmax.f32 %v166, %v195
  %v212 = vmax.f32 %v170, %v196
  %v213 = vmax.f32 %v172, %v197
  %v214 = vmax.f32 %v176, %v198
  %v215 = vmax.f32 %v178, %v199
  %v216 = vmax.f32 %v182, %v200
  %v217 = vmax.f32 %v184, %v201
  %v218 = vld [vmem:[%s2] sm:$0xff]
  %v219 = vld [vmem:[%s2 + $0x8] sm:$0xff]
  %v220 = vld [vmem:[%s2 + $0x10] sm:$0xff]
  %v221 = vld [vmem:[%s2 + $0x18] sm:$0xff]
  %v222 = vld [vmem:[%s3] sm:$0xff]
  %v223 = vld [vmem:[%s3 + $0x8] sm:$0xff]
  %v224 = vld [vmem:[%s3 + $0x10] sm:$0xff]
  %v225 = vld [vmem:[%s3 + $0x18] sm:$0xff]
  %227 = vset.pattern.permute.xlu0 0
  %228 = vperm.xlu0 %227, %v222
  %v229 = vpop.permute.xlu0 %228
  %232 = vset.pattern.permute.xlu0 0
  %233 = vperm.xlu0 %232, %v223
  %v234 = vpop.permute.xlu0 %233
  %237 = vset.pattern.permute.xlu0 0
  %238 = vperm.xlu0 %237, %v224
  %v239 = vpop.permute.xlu0 %238
  %242 = vset.pattern.permute.xlu0 0
  %243 = vperm.xlu0 %242, %v225
  %v244 = vpop.permute.xlu0 %243
  %vm246 = vcmask 523264
  %v248 = vsel %vm246, %v218, 0
  %v251 = vsel %vm246, %v219, 0
  %v254 = vsel %vm246, %v220, 0
  %v257 = vsel %vm246, %v221, 0
  %259 = vmatprep.subr.mxu0 0.0
  %260 = vmatpush1.msra.mxu0 0.0
  %261 = vmatprep.subr.mxu0 0.0
  %262 = vmatpush1.msra.mxu0 0.0
  %263 = vmatprep.subr.mxu0 0.0
  %264 = vmatpush1.msra.mxu0 0.0
  %265 = vmatprep.subr.mxu0 0.0
  %266 = vmatpush1.msra.mxu0 0.0
  %267 = vmatprep.subr.mxu0 0.0
  %268 = vmatpush1.msra.mxu0 0.0
  %269 = vmatprep.subr.mxu0 0.0
  %270 = vmatpush1.msra.mxu0 0.0
  %271 = vmatprep.subr.mxu0 0.0
  %272 = vmatpush1.msra.mxu0 0.0
  %273 = vmatprep.subr.mxu0 0.0
  %274 = vmatpush1.msra.mxu0 0.0
  %275 = vmatprep.subr.mxu0 %v217
  %276 = vmatpush1.msra.mxu0 %v216
  %277 = vmatprep.subr.mxu0 %v215
  %278 = vmatpush1.msra.mxu0 %v214
  %279 = vmatprep.subr.mxu0 %v213
  %280 = vmatpush1.msra.mxu0 %v212
  %281 = vmatprep.subr.mxu0 %v211
  %282 = vmatpush1.msra.mxu0 %v210
  %283 = vmatprep.subr.mxu0 %v209
  %284 = vmatpush1.msra.mxu0 %v208
  %285 = vmatprep.subr.mxu0 %v207
  %286 = vmatpush1.msra.mxu0 %v206
  %287 = vmatprep.subr.mxu0 %v205
  %288 = vmatpush1.msra.mxu0 %v204
  %289 = vmatprep.subr.mxu0 %v203
  %290 = vmatpush1.msra.mxu0 %v202
  %291 = vmatprep.subr.mxu0 0.0
  %292 = vmatpush2.msra.mxu0 0.0
  %293 = vmatprep.subr.mxu0 0.0
  %294 = vmatpush2.msra.mxu0 0.0
  %295 = vmatprep.subr.mxu0 0.0
  %296 = vmatpush2.msra.mxu0 0.0
  %297 = vmatprep.subr.mxu0 0.0
  %298 = vmatpush2.msra.mxu0 0.0
  %299 = vmatprep.subr.mxu0 0.0
  %300 = vmatpush2.msra.mxu0 0.0
  %301 = vmatprep.subr.mxu0 0.0
  %302 = vmatpush2.msra.mxu0 0.0
  %303 = vmatprep.subr.mxu0 0.0
  %304 = vmatpush2.msra.mxu0 0.0
  %305 = vmatprep.subr.mxu0 0.0
  %306 = vmatpush2.msra.mxu0 0.0
  %307 = vmatprep.subr.mxu0 0.0
  %308 = vmatpush2.msra.mxu0 0.0
  %309 = vmatprep.subr.mxu0 0.0
  %310 = vmatpush2.msra.mxu0 0.0
  %311 = vmatprep.subr.mxu0 0.0
  %312 = vmatpush2.msra.mxu0 0.0
  %313 = vmatprep.subr.mxu0 0.0
  %314 = vmatpush2.msra.mxu0 0.0
  %315 = vmatprep.subr.mxu0 0.0
  %316 = vmatpush2.msra.mxu0 0.0
  %317 = vmatprep.subr.mxu0 0.0
  %318 = vmatpush2.msra.mxu0 0.0
  %319 = vmatprep.subr.mxu0 0.0
  %320 = vmatpush2.msra.mxu0 0.0
  %321 = vmatprep.subr.mxu0 0.0
  %322 = vmatpush2.msra.mxu0 0.0
  %323 = vmatprep.mubr.f32.mxu0 0.0
  %324 = vmatmul.mubr.f32.gmra.mxu0 %v248
  %v325 = vpop.f32.mrf.mxu0
  %v326 = vadd.f32 %v229, %v325
  %v327 = vpop.f32.mrf.mxu0
  %v328 = vadd.f32 %v229, %v327
  %329 = vmatprep.mubr.f32.mxu0 0.0
  %330 = vmatmul.mubr.f32.gmra.mxu0 %v251
  %v331 = vpop.f32.mrf.mxu0
  %v332 = vadd.f32 %v234, %v331
  %v333 = vpop.f32.mrf.mxu0
  %v334 = vadd.f32 %v234, %v333
  %335 = vmatprep.mubr.f32.mxu0 0.0
  %336 = vmatmul.mubr.f32.gmra.mxu0 %v254
  %v337 = vpop.f32.mrf.mxu0
  %v338 = vadd.f32 %v239, %v337
  %v339 = vpop.f32.mrf.mxu0
  %v340 = vadd.f32 %v239, %v339
  %341 = vmatprep.mubr.f32.mxu0 0.0
  %342 = vmatmul.mubr.f32.gmra.mxu0 %v257
  %v343 = vpop.f32.mrf.mxu0
  %v344 = vadd.f32 %v244, %v343
  %v345 = vpop.f32.mrf.mxu0
  %v346 = vadd.f32 %v244, %v345
  %347 = vdwg.mxu0
  %v348 = vmul.f32 %v326, 0.01
  %v349 = vmul.f32 %v328, 0.01
  %v350 = vmul.f32 %v332, 0.01
  %v351 = vmul.f32 %v334, 0.01
  %v352 = vmul.f32 %v338, 0.01
  %v353 = vmul.f32 %v340, 0.01
  %v354 = vmul.f32 %v344, 0.01
  %v355 = vmul.f32 %v346, 0.01
  %v356 = vmax.f32 %v326, %v348
  %v357 = vmax.f32 %v328, %v349
  %v358 = vmax.f32 %v332, %v350
  %v359 = vmax.f32 %v334, %v351
  %v360 = vmax.f32 %v338, %v352
  %v361 = vmax.f32 %v340, %v353
  %v362 = vmax.f32 %v344, %v354
  %v363 = vmax.f32 %v346, %v355
  %v364 = vld [vmem:[%s4] sm:$0xff]
  %v365 = vld [vmem:[%s4 + $0x8] sm:$0xff]
  %v366 = vld [vmem:[%s5] sm:$0xff]
  %v367 = vld [vmem:[%s5 + $0x8] sm:$0xff]
  %369 = vset.pattern.permute.xlu0 0
  %370 = vperm.xlu0 %369, %v366
  %v371 = vpop.permute.xlu0 %370
  %374 = vset.pattern.permute.xlu0 0
  %375 = vperm.xlu0 %374, %v367
  %v376 = vpop.permute.xlu0 %375
  %vm378 = vcmask 261120
  %v380 = vsel %vm378, %v364, 0
  %v383 = vsel %vm378, %v365, 0
  %385 = vmatprep.subr.mxu0 0.0
  %386 = vmatpush1.msra.mxu0 0.0
  %387 = vmatprep.subr.mxu0 0.0
  %388 = vmatpush1.msra.mxu0 0.0
  %389 = vmatprep.subr.mxu0 0.0
  %390 = vmatpush1.msra.mxu0 0.0
  %391 = vmatprep.subr.mxu0 0.0
  %392 = vmatpush1.msra.mxu0 0.0
  %393 = vmatprep.subr.mxu0 0.0
  %394 = vmatpush1.msra.mxu0 0.0
  %395 = vmatprep.subr.mxu0 0.0
  %396 = vmatpush1.msra.mxu0 0.0
  %397 = vmatprep.subr.mxu0 0.0
  %398 = vmatpush1.msra.mxu0 0.0
  %399 = vmatprep.subr.mxu0 0.0
  %400 = vmatpush1.msra.mxu0 0.0
  %401 = vmatprep.subr.mxu0 0.0
  %402 = vmatpush1.msra.mxu0 0.0
  %403 = vmatprep.subr.mxu0 0.0
  %404 = vmatpush1.msra.mxu0 0.0
  %405 = vmatprep.subr.mxu0 0.0
  %406 = vmatpush1.msra.mxu0 0.0
  %407 = vmatprep.subr.mxu0 0.0
  %408 = vmatpush1.msra.mxu0 0.0
  %409 = vmatprep.subr.mxu0 %v363
  %410 = vmatpush1.msra.mxu0 %v362
  %411 = vmatprep.subr.mxu0 %v361
  %412 = vmatpush1.msra.mxu0 %v360
  %413 = vmatprep.subr.mxu0 %v359
  %414 = vmatpush1.msra.mxu0 %v358
  %415 = vmatprep.subr.mxu0 %v357
  %416 = vmatpush1.msra.mxu0 %v356
  %417 = vmatprep.subr.mxu0 0.0
  %418 = vmatpush2.msra.mxu0 0.0
  %419 = vmatprep.subr.mxu0 0.0
  %420 = vmatpush2.msra.mxu0 0.0
  %421 = vmatprep.subr.mxu0 0.0
  %422 = vmatpush2.msra.mxu0 0.0
  %423 = vmatprep.subr.mxu0 0.0
  %424 = vmatpush2.msra.mxu0 0.0
  %425 = vmatprep.subr.mxu0 0.0
  %426 = vmatpush2.msra.mxu0 0.0
  %427 = vmatprep.subr.mxu0 0.0
  %428 = vmatpush2.msra.mxu0 0.0
  %429 = vmatprep.subr.mxu0 0.0
  %430 = vmatpush2.msra.mxu0 0.0
  %431 = vmatprep.subr.mxu0 0.0
  %432 = vmatpush2.msra.mxu0 0.0
  %433 = vmatprep.subr.mxu0 0.0
  %434 = vmatpush2.msra.mxu0 0.0
  %435 = vmatprep.subr.mxu0 0.0
  %436 = vmatpush2.msra.mxu0 0.0
  %437 = vmatprep.subr.mxu0 0.0
  %438 = vmatpush2.msra.mxu0 0.0
  %439 = vmatprep.subr.mxu0 0.0
  %440 = vmatpush2.msra.mxu0 0.0
  %441 = vmatprep.subr.mxu0 0.0
  %442 = vmatpush2.msra.mxu0 0.0
  %443 = vmatprep.subr.mxu0 0.0
  %444 = vmatpush2.msra.mxu0 0.0
  %445 = vmatprep.subr.mxu0 0.0
  %446 = vmatpush2.msra.mxu0 0.0
  %447 = vmatprep.subr.mxu0 0.0
  %448 = vmatpush2.msra.mxu0 0.0
  %449 = vmatprep.mubr.f32.mxu0 0.0
  %450 = vmatmul.mubr.f32.gmra.mxu0 %v380
  %v451 = vpop.f32.mrf.mxu0
  %v452 = vadd.f32 %v371, %v451
  %v453 = vpop.f32.mrf.mxu0
  %v454 = vadd.f32 %v371, %v453
  %455 = vmatprep.mubr.f32.mxu0 0.0
  %456 = vmatmul.mubr.f32.gmra.mxu0 %v383
  %v457 = vpop.f32.mrf.mxu0
  %v458 = vadd.f32 %v376, %v457
  %v459 = vpop.f32.mrf.mxu0
  %v460 = vadd.f32 %v376, %v459
  %461 = vdwg.mxu0
  %v462 = vmul.f32 %v452, 0.01
  %v463 = vmul.f32 %v454, 0.01
  %v464 = vmul.f32 %v458, 0.01
  %v465 = vmul.f32 %v460, 0.01
  %v466 = vmax.f32 %v452, %v462
  %v467 = vmax.f32 %v454, %v463
  %v468 = vmax.f32 %v458, %v464
  %v469 = vmax.f32 %v460, %v465
  %v470 = vld [vmem:[%s6] sm:$0x3]
  %v471 = vld [vmem:[%s7] sm:$0x3]
  %473 = vset.pattern.permute.xlu0 0
  %474 = vperm.xlu0 %473, %v471
  %v475 = vpop.permute.xlu0 %474
  %vm477 = vcmask 130048
  %v479 = vsel %vm477, %v470, 0
  %481 = vmatprep.subr.mxu0 0.0
  %482 = vmatpush1.msra.mxu0 0.0
  %483 = vmatprep.subr.mxu0 0.0
  %484 = vmatpush1.msra.mxu0 0.0
  %485 = vmatprep.subr.mxu0 0.0
  %486 = vmatpush1.msra.mxu0 0.0
  %487 = vmatprep.subr.mxu0 0.0
  %488 = vmatpush1.msra.mxu0 0.0
  %489 = vmatprep.subr.mxu0 0.0
  %490 = vmatpush1.msra.mxu0 0.0
  %491 = vmatprep.subr.mxu0 0.0
  %492 = vmatpush1.msra.mxu0 0.0
  %493 = vmatprep.subr.mxu0 0.0
  %494 = vmatpush1.msra.mxu0 0.0
  %495 = vmatprep.subr.mxu0 0.0
  %496 = vmatpush1.msra.mxu0 0.0
  %497 = vmatprep.subr.mxu0 0.0
  %498 = vmatpush1.msra.mxu0 0.0
  %499 = vmatprep.subr.mxu0 0.0
  %500 = vmatpush1.msra.mxu0 0.0
  %501 = vmatprep.subr.mxu0 0.0
  %502 = vmatpush1.msra.mxu0 0.0
  %503 = vmatprep.subr.mxu0 0.0
  %504 = vmatpush1.msra.mxu0 0.0
  %505 = vmatprep.subr.mxu0 0.0
  %506 = vmatpush1.msra.mxu0 0.0
  %507 = vmatprep.subr.mxu0 0.0
  %508 = vmatpush1.msra.mxu0 0.0
  %509 = vmatprep.subr.mxu0 %v469
  %510 = vmatpush1.msra.mxu0 %v468
  %511 = vmatprep.subr.mxu0 %v467
  %512 = vmatpush1.msra.mxu0 %v466
  %513 = vmatprep.subr.mxu0 0.0
  %514 = vmatpush2.msra.mxu0 0.0
  %515 = vmatprep.subr.mxu0 0.0
  %516 = vmatpush2.msra.mxu0 0.0
  %517 = vmatprep.subr.mxu0 0.0
  %518 = vmatpush2.msra.mxu0 0.0
  %519 = vmatprep.subr.mxu0 0.0
  %520 = vmatpush2.msra.mxu0 0.0
  %521 = vmatprep.subr.mxu0 0.0
  %522 = vmatpush2.msra.mxu0 0.0
  %523 = vmatprep.subr.mxu0 0.0
  %524 = vmatpush2.msra.mxu0 0.0
  %525 = vmatprep.subr.mxu0 0.0
  %526 = vmatpush2.msra.mxu0 0.0
  %527 = vmatprep.subr.mxu0 0.0
  %528 = vmatpush2.msra.mxu0 0.0
  %529 = vmatprep.subr.mxu0 0.0
  %530 = vmatpush2.msra.mxu0 0.0
  %531 = vmatprep.subr.mxu0 0.0
  %532 = vmatpush2.msra.mxu0 0.0
  %533 = vmatprep.subr.mxu0 0.0
  %534 = vmatpush2.msra.mxu0 0.0
  %535 = vmatprep.subr.mxu0 0.0
  %536 = vmatpush2.msra.mxu0 0.0
  %537 = vmatprep.subr.mxu0 0.0
  %538 = vmatpush2.msra.mxu0 0.0
  %539 = vmatprep.subr.mxu0 0.0
  %540 = vmatpush2.msra.mxu0 0.0
  %541 = vmatprep.subr.mxu0 0.0
  %542 = vmatpush2.msra.mxu0 0.0
  %543 = vmatprep.subr.mxu0 0.0
  %544 = vmatpush2.msra.mxu0 0.0
  %545 = vmatprep.mubr.f32.mxu0 0.0
  %546 = vmatmul.mubr.f32.gmra.mxu0 %v479
  %v547 = vpop.f32.mrf.mxu0
  %v548 = vadd.f32 %v475, %v547
  %v549 = vpop.f32.mrf.mxu0
  %v550 = vadd.f32 %v475, %v549
  %551 = vdwg.mxu0
  %v554 = vcombine.low %v548, %v550
  %v556 = vunpack.c.l.s4 1983009808
  %v557 = vunpack.c.0.s8 %v556
  %v558 = vlaneseq
  %v559 = vshrl.u32 %v558, 7
  %v560 = vsub.s32 %v557, %v559
  %v561 = vrot.slane %v554, %v560
  %563 = vst [vmem:[%s8] sm:$0xf] %v561
  // Predicated region
  $region34: #{linear_class_forward.1} parent=0 // pred_check
    _
  $region35: #{linear_class_forward.1} parent=0 // pred_check_branch
    %565 = sbr.rel (0) target = $region37
  $region36: #{linear_class_forward.1} parent=0 // pred_region
    _
  $region37: #{linear_class_forward.1} parent=0 // pred_fallthru
    _
  // Predicated region
  $region38: #{linear_class_forward.1} parent=0 // pred_check
    _
  $region39: #{linear_class_forward.1} parent=0 // pred_check_branch
    %567 = sbr.rel (0) target = $region41
  $region40: #{linear_class_forward.1} parent=0 // pred_region
    _
  $region41: #{linear_class_forward.1} parent=0 // pred_fallthru
    _

</llo_original>
